<compile_context>
chip_gen: v7x
topology: tpu7x:2x2x1
jax: 0.10.0
libtpu: 0.0.40
codegen_flags: <defaults>
</compile_context>

<pallas_src>
import numpy as np
import jax
import jax.numpy as jnp
from jax.experimental import pallas as pl
from jax.experimental.pallas import tpu as pltpu


def make_sinusoid_table(n_position: int, d_hid: int) -> jnp.ndarray:
    """Reproduce PositionalEncoding._get_sinusoid_encoding_table exactly."""
    pos = np.arange(n_position, dtype=np.float64)[:, None]            # (P, 1)
    hid = np.arange(d_hid)                                            # (D,)
    angle_rates = 1.0 / np.power(10000.0, 2 * (hid // 2) / d_hid)     # (D,)
    table = pos * angle_rates[None, :]                                # (P, D)
    table[:, 0::2] = np.sin(table[:, 0::2])
    table[:, 1::2] = np.cos(table[:, 1::2])
    return jnp.asarray(table, dtype=jnp.float32)                      # (P, D)


# ~2 MiB per (double-buffered) block: safe against v5e's 16 MiB default scoped
# VMEM, v7x's 64 MiB physical VMEM, and big enough to amortize grid-step cost.
_TARGET_BLOCK_BYTES = 2 * 1024 * 1024


def _choose_blocks(n_rows: int, n_cols: int, itemsize: int):
    """Pick (row_block, col_block) respecting the (8, 128) tiling rule."""
    target_elems = _TARGET_BLOCK_BYTES // itemsize
    base_rows = n_rows if n_rows <= 8 else 8

    # Lane (last) dim: a large multiple of 128, or the full width when S*D is
    # not 128-divisible (the "equal full array dim" exception keeps it legal).
    if n_cols % 128 == 0:
        col_budget = max(128, (target_elems // base_rows // 128) * 128)
        cb = min(n_cols, col_budget)
    else:
        cb = n_cols

    # Sublane (second-last) dim: full B when small, else a multiple of 8.
    if n_rows <= 8:
        rb = n_rows
    else:
        budget_rows = max(8, (target_elems // cb // 8) * 8)
        rb = min(budget_rows, ((n_rows + 7) // 8) * 8)
    return rb, cb


def _add_pos_kernel(x_ref, pos_ref, o_ref):
    # x_ref/o_ref: (RB, CB) rows of flattened (S*D) features; pos_ref: (1, CB).
    # (RB, CB) + (1, CB): cheap sublane broadcast on the VPU.
    o_ref[...] = x_ref[...] + pos_ref[...]


def positional_encoding_forward(x: jnp.ndarray, pos_table: jnp.ndarray) -> jnp.ndarray:
    """x: (B, S, D); pos_table: (n_position, D). Returns x + pos_table[:S]."""
    B, S, D = x.shape
    n_position = pos_table.shape[0]
    if S > n_position:
        raise ValueError(f"sequence length {S} exceeds n_position {n_position}")

    cols = S * D
    # Wrapper-side layout plumbing (free collapses of contiguous trailing dims):
    # present a lane-dense (B, S*D) output slab to the kernel.
    x2 = x.reshape(B, cols)
    pos2 = pos_table[:S, :].reshape(1, cols).astype(x.dtype)

    rb, cb = _choose_blocks(B, cols, jnp.dtype(x.dtype).itemsize)

    # Column axis OUTER, row axis INNER: pos block index depends only on the
    # outer axis, so its DMA is skipped while iterating rows.
    grid = (pl.cdiv(cols, cb), pl.cdiv(B, rb))

    out2 = pl.pallas_call(
        _add_pos_kernel,
        out_shape=jax.ShapeDtypeStruct((B, cols), x.dtype),
        grid_spec=pltpu.PrefetchScalarGridSpec(
            num_scalar_prefetch=0,
            grid=grid,
            in_specs=[
                pl.BlockSpec((rb, cb), lambda j, i: (i, j)),   # x
                pl.BlockSpec((1, cb), lambda j, i: (0, j)),    # pos (row-invariant)
            ],
            out_specs=pl.BlockSpec((rb, cb), lambda j, i: (i, j)),
        ),
        compiler_params=pltpu.CompilerParams(
            dimension_semantics=("parallel", "parallel"),
            # ~2 MiB blocks x (x, out, pos) x double-buffering stays well under
            # this; explicit so v5e (16 MiB default) and v7x behave identically.
            vmem_limit_bytes=32 * 1024 * 1024,
        ),
    )(x2, pos2)

    return out2.reshape(B, S, D)


if __name__ == "__main__":
    # Module config (deterministic, in-script): d_hid=32, n_position=200.
    d_hid = 32
    n_position = 200
    pos_table = make_sinusoid_table(n_position, d_hid)  # (200, 32)

    # Example input: batch=2, seq=8, hidden=32.
    key = jax.random.PRNGKey(0)
    x = jax.random.normal(key, (2, 8, d_hid), dtype=jnp.float32)

    out = positional_encoding_forward(x, pos_table)
    out = jax.block_until_ready(out)

    # Reference check (plain JAX broadcast add).
    ref = x + pos_table[None, : x.shape[1], :]
    np.testing.assert_allclose(np.asarray(out), np.asarray(ref), rtol=1e-6, atol=1e-6)

    print("KERNEL_OK")
</pallas_src>

<mosaic_0001>
module attributes {stable_mosaic.version = 11 : i64} {
  func.func @_add_pos_kernel(%arg0: i32, %arg1: i32, %arg2: memref<2x256xf32, #tpu.memory_space<vmem>>, %arg3: memref<1x256xf32, #tpu.memory_space<vmem>>, %arg4: memref<2x256xf32, #tpu.memory_space<vmem>>) attributes {dimension_semantics = [#tpu.dimension_semantics<parallel>, #tpu.dimension_semantics<parallel>], iteration_bounds = array<i64: 1, 1>, scalar_prefetch = 0 : i64, scratch_operands = 0 : i64, tpu.core_type = #tpu.core_type<tc>, window_params = [{transform_indices = @transform_0, window_bounds = array<i64: 2, 256>}, {transform_indices = @transform_1, window_bounds = array<i64: 1, 256>}, {transform_indices = @transform_2, window_bounds = array<i64: 2, 256>}]} {
    %c0 = arith.constant 0 : index
    %c0_0 = arith.constant 0 : index
    %0 = vector.load %arg2[%c0, %c0_0] : memref<2x256xf32, #tpu.memory_space<vmem>>, vector<2x256xf32>
    %c0_1 = arith.constant 0 : index
    %c0_2 = arith.constant 0 : index
    %1 = vector.load %arg3[%c0_1, %c0_2] : memref<1x256xf32, #tpu.memory_space<vmem>>, vector<1x256xf32>
    %2 = vector.broadcast %1 : vector<1x256xf32> to vector<2x256xf32>
    %3 = arith.addf %0, %2 : vector<2x256xf32>
    %c0_3 = arith.constant 0 : index
    %c0_4 = arith.constant 0 : index
    %4 = vector.load %arg4[%c0_3, %c0_4] : memref<2x256xf32, #tpu.memory_space<vmem>>, vector<2x256xf32>
    tpu.vector_store %arg4[%c0_3, %c0_4], %3 {strides = array<i32>} : memref<2x256xf32, #tpu.memory_space<vmem>>, vector<2x256xf32>,
    return
  }
  func.func @transform_0(%arg0: i32, %arg1: i32) -> (i32, i32) {
    %c0_i32 = arith.constant 0 : i32
    return %arg1, %arg0 : i32, i32
  }
  func.func @transform_1(%arg0: i32, %arg1: i32) -> (i32, i32) {
    %c0_i32 = arith.constant 0 : i32
    %c0_i32_0 = arith.constant 0 : i32
    return %c0_i32, %arg0 : i32, i32
  }
  func.func @transform_2(%arg0: i32, %arg1: i32) -> (i32, i32) {
    %c0_i32 = arith.constant 0 : i32
    return %arg1, %arg0 : i32, i32
  }
}

</mosaic_0001>

<llo_original>
// kernel: tpu_custom_call.1
$region0: #{tpu_custom_call.1}
  #allocation0 [shape = 'u32[]', space=smem, size = 0x4, offset = 0x4, fixed_abs, tag = 'smem constant byte address 0x4 - core index']
  #allocation1 [shape = 'u32[144,128]{1,0:T(1,128)}', space=vmem, size = 0x12000, scoped, tag = 'internal scratch']
  %s0 = inlined_call_operand.hbm [shape: f32[2,256], index: 0, kind: input, shape index: {}]
  %s1 = inlined_call_operand.vmem [shape: f32[1,256], index: 1, kind: input, shape index: {}]
  %s2 = inlined_call_operand.hbm [shape: f32[2,256], index: 2, kind: output, shape index: {}]
  %s3 = sld [smem:[#allocation0]]
  $region22: #{tpu_custom_call.1} parent=0
    _
  %s5 = ssub.s32 1, %s3
  %s6 = scalar_select 0, %s5, %s3
  $region1: #{tpu_custom_call.1} parent=0
    #allocation2 [shape = 'u8[2048]{0}', space=vmem, size = 0x800, scoped, tag = 'input window, operand 0, single buffered']
    #allocation3 [shape = 's32[1]{0}', space=sflag, size = 0x4, scoped, tag = 'scoped memory for tpu_custom_call.1']
    #allocation4 [shape = 's32[1]{0}', space=sflag, size = 0x4, scoped, tag = 'scoped memory for tpu_custom_call.1']
    #allocation5 [shape = 'u8[2048]{0}', space=vmem, size = 0x800, scoped, tag = 'output window, operand 0, single buffered']
    %7 = vsyncpa [#allocation3], 0
    %8 = vsyncpa [#allocation4], 0
    // Predicated region
    $region2: #{tpu_custom_call.1} parent=1 // pred_check
      _
    $region3: #{tpu_custom_call.1} parent=1 // pred_check_branch
      %10 = sbr.rel (0) target = $region5
    $region4: #{tpu_custom_call.1} parent=1 // pred_region
      %s12 = ssub.s32 64, 64
      %13 = vsyncadd [#allocation3], %s12
      %s15 = sshll.u32 [#allocation2], 4
      %s16 = int_to_ptr.vmem [resolvable:$true] %s15
      %18 = dma.hbm_to_vmem [thread:$0]  %s0, 64, %s16, [#allocation3]
    $region5: #{tpu_custom_call.1} parent=1 // pred_fallthru
      _
    // Predicated region
    $region6: #{tpu_custom_call.1} parent=1 // pred_check
      _
    $region7: #{tpu_custom_call.1} parent=1 // pred_check_branch
      %20 = sbr.rel (0) target = $region9
    $region8: #{tpu_custom_call.1} parent=1 // pred_region
      _
    $region9: #{tpu_custom_call.1} parent=1 // pred_fallthru
      _
    // Predicated region
    $region10: #{tpu_custom_call.1} parent=1 // pred_check
      _
    $region11: #{tpu_custom_call.1} parent=1 // pred_check_branch
      %22 = sbr.rel (0) target = $region13
    $region12: #{tpu_custom_call.1} parent=1 // pred_region
      %23 = dma.done [#allocation3], 64
    $region13: #{tpu_custom_call.1} parent=1 // pred_fallthru
      _
    %v24 = vld [vmem:[#allocation2] sm:$0xf]
    %v25 = vld [vmem:[%s1] sm:$0x3]
    %v27 = vlaneseq
    %v28 = vshrl.u32 %v27, 7
    %v29 = vsub.s32 0, %v28
    %v30 = vrot.slane %v25, %v29
    %v31 = vlaneseq
    %v32 = vshrl.u32 %v31, 7
    %v33 = vsub.s32 1, %v32
    %v34 = vrot.slane %v25, %v33
    %v35 = vcombine.low %v30, %v34
    %v37 = vunpack.c.l.s4 1983009808
    %v38 = vunpack.c.0.s8 %v37
    %v39 = vlaneseq
    %v40 = vshrl.u32 %v39, 7
    %v41 = vsub.s32 %v38, %v40
    %v42 = vrot.slane %v35, %v41
    %v44 = vadd.f32 %v24, %v42
    %45 = vst [vmem:[#allocation5] sm:$0xf] %v44
    // Predicated region
    $region14: #{tpu_custom_call.1} parent=1 // pred_check
      _
    $region15: #{tpu_custom_call.1} parent=1 // pred_check_branch
      %47 = sbr.rel (0) target = $region17
    $region16: #{tpu_custom_call.1} parent=1 // pred_region
      %s49 = ssub.s32 64, 64
      %50 = vsyncadd [#allocation4], %s49
      %s52 = sshll.u32 [#allocation5], 4
      %s53 = int_to_ptr.vmem [resolvable:$true] %s52
      %55 = dma.vmem_to_hbm [thread:$0]  %s53, 64, %s2, [#allocation4]
    $region17: #{tpu_custom_call.1} parent=1 // pred_fallthru
      _
    // Predicated region
    $region18: #{tpu_custom_call.1} parent=1 // pred_check
      _
    $region19: #{tpu_custom_call.1} parent=1 // pred_check_branch
      %57 = sbr.rel (0) target = $region21
    $region20: #{tpu_custom_call.1} parent=1 // pred_region
      %58 = dma.done [#allocation4], 64
    $region21: #{tpu_custom_call.1} parent=1 // pred_fallthru
      _
    %59 = vsyncpa [#allocation3], 1
    %60 = vsyncpa [#allocation4], 1

</llo_original>
